<compile_context>
chip_gen: v6e
topology: v6e:2x2x1
jax: 0.10.0
libtpu: 0.0.40
codegen_flags: <defaults>
</compile_context>

<pallas_src>
import functools

import jax
import jax.numpy as jnp
from jax.experimental import pallas as pl
from jax.experimental.pallas import tpu as pltpu

HIDDEN = 60
HIDDEN_PAD = 128   # lane-dense padding of the 60-wide hidden dimension
LANE = 128


def _round_up(x, m):
    return (x + m - 1) // m * m


def _choose_tile(B, tb_max=2048, min_tiles=4):
    """Pick a batch tile: big tiles for throughput, >= min_tiles grid steps for
    megacore sharding, and tile ~= B/n_tiles to bound padding waste."""
    B8 = _round_up(max(B, 1), 8)
    if B8 <= 8 * min_tiles:            # tiny batch: one minimal tile
        return B8
    n_tiles = max(min_tiles, pl.cdiv(B8, tb_max))
    return min(_round_up(pl.cdiv(B8, n_tiles), 8), tb_max)


def dqn_kernel(x_ref, w1_ref, b1_ref, wmid_ref, bmid_ref, w5_ref, b5_ref, out_ref,
               *, n_out):
    # Layer 1: (TB, n_in)bf16 @ (n_in, 128)bf16 -> f32 acc, +b1, ReLU.
    h = jnp.dot(x_ref[...], w1_ref[...],
                preferred_element_type=jnp.float32) + b1_ref[...]
    h = jnp.maximum(h, 0.0)

    # Layers 2-4: stacked (3, 128, 128) bf16 weights, static unroll, f32 accumulate.
    for k in range(3):
        h = jnp.dot(h.astype(jnp.bfloat16), wmid_ref[k],
                    preferred_element_type=jnp.float32) + bmid_ref[k]
        h = jnp.maximum(h, 0.0)

    # Layer 5 -> logits over the lane-dense padded output width.
    logits = jnp.dot(h.astype(jnp.bfloat16), w5_ref[...],
                     preferred_element_type=jnp.float32) + b5_ref[...]

    # Masked, numerically stable softmax over the real n_out columns (dim=1).
    col = jax.lax.broadcasted_iota(jnp.int32, logits.shape, 1)
    logits = jnp.where(col < n_out, logits, jnp.float32(-1e30))
    m = jnp.max(logits, axis=1, keepdims=True)
    e = jnp.exp(logits - m)                       # padded cols underflow to exactly 0
    denom = jnp.sum(e, axis=1, keepdims=True)
    inv = pl.reciprocal(denom, approx=True)       # EUP slot (otherwise idle)
    inv = inv * (2.0 - denom * inv)               # one Newton step -> ~f32 accuracy
    out_ref[...] = (e * inv).astype(out_ref.dtype)


def pack_params(params):
    """Pad hidden 60->128 and out-dim to a lane multiple, stack layers 2-4, cast
    weights to bf16 (f32 biases). Call once at load time."""
    pad_h = HIDDEN_PAD - HIDDEN
    n_out = params["w5"].shape[1]
    pad_o = _round_up(n_out, LANE) - n_out
    return dict(
        n_out=n_out,
        w1=jnp.pad(params["w1"], ((0, 0), (0, pad_h))).astype(jnp.bfloat16),
        b1=jnp.pad(params["b1"], ((0, 0), (0, pad_h))).astype(jnp.float32),
        wmid=jnp.stack([jnp.pad(params[f"w{i}"], ((0, pad_h), (0, pad_h)))
                        for i in (2, 3, 4)]).astype(jnp.bfloat16),
        bmid=jnp.stack([jnp.pad(params[f"b{i}"], ((0, 0), (0, pad_h)))
                        for i in (2, 3, 4)]).astype(jnp.float32),
        w5=jnp.pad(params["w5"], ((0, pad_h), (0, pad_o))).astype(jnp.bfloat16),
        b5=jnp.pad(params["b5"], ((0, 0), (0, pad_o))).astype(jnp.float32),
    )


def dqn_4l60_forward(x, packed, tb_max=2048):
    """x: (B, n_in). packed: output of pack_params. Returns softmax probs (B, n_out)."""
    B, n_in = x.shape
    n_out = packed["n_out"]
    out_pad = packed["w5"].shape[1]

    tb = _choose_tile(B, tb_max)
    padded_b = _round_up(B, tb)
    x = x.astype(jnp.bfloat16)                    # bf16 MXU operands, half the DMA
    if padded_b != B:
        x = jnp.pad(x, ((0, padded_b - B), (0, 0)))
    grid = (padded_b // tb,)

    const2 = lambda i: (0, 0)        # parameters: same block every step -> VMEM-resident
    const3 = lambda i: (0, 0, 0)

    out = pl.pallas_call(
        functools.partial(dqn_kernel, n_out=n_out),
        out_shape=jax.ShapeDtypeStruct((padded_b, out_pad), jnp.float32),
        grid=grid,
        in_specs=[
            pl.BlockSpec((tb, n_in), lambda i: (i, 0)),                # x streams
            pl.BlockSpec((n_in, HIDDEN_PAD), const2),                  # w1
            pl.BlockSpec((1, HIDDEN_PAD), const2),                     # b1
            pl.BlockSpec((3, HIDDEN_PAD, HIDDEN_PAD), const3),         # w2..w4 stacked
            pl.BlockSpec((3, 1, HIDDEN_PAD), const3),                  # b2..b4 stacked
            pl.BlockSpec((HIDDEN_PAD, out_pad), const2),               # w5 (padded out)
            pl.BlockSpec((1, out_pad), const2),                        # b5 (padded out)
        ],
        out_specs=pl.BlockSpec((tb, out_pad), lambda i: (i, 0)),       # lane-dense store
        compiler_params=pltpu.CompilerParams(
            dimension_semantics=("parallel",),     # batch axis -> both TCs on v7x
            vmem_limit_bytes=32 * 1024 * 1024),
    )(x, packed["w1"], packed["b1"], packed["wmid"], packed["bmid"],
      packed["w5"], packed["b5"])

    return out[:B, :n_out]


def init_params(key, n_inputs, n_outputs):
    """Deterministic init mimicking PyTorch Linear default (uniform +/- 1/sqrt(fan_in)).
    Stored as (in, out) so the kernel computes x @ W + b."""
    dims = [(n_inputs, HIDDEN), (HIDDEN, HIDDEN), (HIDDEN, HIDDEN),
            (HIDDEN, HIDDEN), (HIDDEN, n_outputs)]
    params = {}
    for i, (fan_in, fan_out) in enumerate(dims, start=1):
        key, kw, kb = jax.random.split(key, 3)
        bound = 1.0 / jnp.sqrt(fan_in)
        params[f"w{i}"] = jax.random.uniform(
            kw, (fan_in, fan_out), jnp.float32, -bound, bound)
        params[f"b{i}"] = jax.random.uniform(
            kb, (1, fan_out), jnp.float32, -bound, bound)
    return params


def reference_forward(x, params):
    h = x
    for i in range(1, 5):
        h = jnp.maximum(h @ params[f"w{i}"] + params[f"b{i}"], 0.0)
    logits = h @ params["w5"] + params["b5"]
    return jax.nn.softmax(logits, axis=1)


if __name__ == "__main__":
    key = jax.random.PRNGKey(0)
    key, kx = jax.random.split(key)

    batch, n_inputs, n_outputs = 2, 16, 4
    x = jax.random.normal(kx, (batch, n_inputs), jnp.float32)
    params = init_params(key, n_inputs, n_outputs)
    packed = pack_params(params)   # one-time padding/stacking/bf16 cast at load time

    out = dqn_4l60_forward(x, packed)
    out = jax.block_until_ready(out)

    ref = reference_forward(x, params)   # f32 reference
    assert out.shape == (batch, n_outputs)
    # bf16 MXU operands (f32 accumulation) -> relaxed tolerance vs f32 reference.
    assert jnp.allclose(out, ref, atol=2e-2, rtol=2e-2), "mismatch vs reference"
    assert jnp.allclose(jnp.sum(out, axis=1), 1.0, atol=1e-5), "softmax rows must sum to 1"

    print("KERNEL_OK")
</pallas_src>

<mosaic_0001>
module attributes {stable_mosaic.version = 11 : i64} {
  func.func @dqn_kernel(%arg0: i32, %arg1: memref<8x16xbf16, #tpu.memory_space<vmem>>, %arg2: memref<16x128xbf16, #tpu.memory_space<vmem>>, %arg3: memref<1x128xf32, #tpu.memory_space<vmem>>, %arg4: memref<3x128x128xbf16, #tpu.memory_space<vmem>>, %arg5: memref<3x1x128xf32, #tpu.memory_space<vmem>>, %arg6: memref<128x128xbf16, #tpu.memory_space<vmem>>, %arg7: memref<1x128xf32, #tpu.memory_space<vmem>>, %arg8: memref<8x128xf32, #tpu.memory_space<vmem>>) attributes {dimension_semantics = [#tpu.dimension_semantics<parallel>], iteration_bounds = array<i64: 1>, scalar_prefetch = 0 : i64, scratch_operands = 0 : i64, tpu.core_type = #tpu.core_type<tc>, window_params = [{transform_indices = @transform_0, window_bounds = array<i64: 8, 16>}, {pipeline_mode = #tpu.pipeline_mode<synchronous>, transform_indices = @transform_1, window_bounds = array<i64: 16, 128>}, {pipeline_mode = #tpu.pipeline_mode<synchronous>, transform_indices = @transform_2, window_bounds = array<i64: 1, 128>}, {pipeline_mode = #tpu.pipeline_mode<synchronous>, transform_indices = @transform_3, window_bounds = array<i64: 3, 128, 128>}, {pipeline_mode = #tpu.pipeline_mode<synchronous>, transform_indices = @transform_4, window_bounds = array<i64: 3, 1, 128>}, {pipeline_mode = #tpu.pipeline_mode<synchronous>, transform_indices = @transform_5, window_bounds = array<i64: 128, 128>}, {pipeline_mode = #tpu.pipeline_mode<synchronous>, transform_indices = @transform_6, window_bounds = array<i64: 1, 128>}, {transform_indices = @transform_7, window_bounds = array<i64: 8, 128>}]} {
    %c0 = arith.constant 0 : index
    %c0_0 = arith.constant 0 : index
    %0 = vector.load %arg1[%c0, %c0_0] : memref<8x16xbf16, #tpu.memory_space<vmem>>, vector<8x16xbf16>
    %c0_1 = arith.constant 0 : index
    %c0_2 = arith.constant 0 : index
    %1 = vector.load %arg2[%c0_1, %c0_2] : memref<16x128xbf16, #tpu.memory_space<vmem>>, vector<16x128xbf16>
    %cst = arith.constant dense<0.000000e+00> : vector<8x128xf32>
    %2 = tpu.matmul %0, %1, %cst {dimension_numbers = #tpu.dot_dimension_numbers<[1], [0], [0], [1], [0, 0, 1, 1], [], []>} : vector<8x16xbf16>, vector<16x128xbf16>, vector<8x128xf32> -> vector<8x128xf32>
    %c0_3 = arith.constant 0 : index
    %c0_4 = arith.constant 0 : index
    %3 = vector.load %arg3[%c0_3, %c0_4] : memref<1x128xf32, #tpu.memory_space<vmem>>, vector<1x128xf32>
    %4 = vector.broadcast %3 : vector<1x128xf32> to vector<8x128xf32>
    %5 = arith.addf %2, %4 : vector<8x128xf32>
    %cst_5 = arith.constant 0.000000e+00 : f32
    %6 = vector.broadcast %cst_5 : f32 to vector<8x128xf32>
    %7 = arith.maximumf %5, %6 : vector<8x128xf32>
    %8 = arith.truncf %7 : vector<8x128xf32> to vector<8x128xbf16>
    %c0_6 = arith.constant 0 : index
    %c0_7 = arith.constant 0 : index
    %c0_8 = arith.constant 0 : index
    %9 = vector.load %arg4[%c0_6, %c0_7, %c0_8] : memref<3x128x128xbf16, #tpu.memory_space<vmem>>, vector<1x128x128xbf16>
    %10 = vector.shape_cast %9 : vector<1x128x128xbf16> to vector<128x128xbf16>
    %cst_9 = arith.constant dense<0.000000e+00> : vector<8x128xf32>
    %11 = tpu.matmul %8, %10, %cst_9 {dimension_numbers = #tpu.dot_dimension_numbers<[1], [0], [0], [1], [0, 0, 1, 1], [], []>} : vector<8x128xbf16>, vector<128x128xbf16>, vector<8x128xf32> -> vector<8x128xf32>
    %c0_10 = arith.constant 0 : index
    %c0_11 = arith.constant 0 : index
    %c0_12 = arith.constant 0 : index
    %12 = vector.load %arg5[%c0_10, %c0_11, %c0_12] : memref<3x1x128xf32, #tpu.memory_space<vmem>>, vector<1x1x128xf32>
    %13 = vector.shape_cast %12 : vector<1x1x128xf32> to vector<1x128xf32>
    %14 = vector.broadcast %13 : vector<1x128xf32> to vector<8x128xf32>
    %15 = arith.addf %11, %14 : vector<8x128xf32>
    %cst_13 = arith.constant 0.000000e+00 : f32
    %16 = vector.broadcast %cst_13 : f32 to vector<8x128xf32>
    %17 = arith.maximumf %15, %16 : vector<8x128xf32>
    %18 = arith.truncf %17 : vector<8x128xf32> to vector<8x128xbf16>
    %c1 = arith.constant 1 : index
    %c0_14 = arith.constant 0 : index
    %c0_15 = arith.constant 0 : index
    %19 = vector.load %arg4[%c1, %c0_14, %c0_15] : memref<3x128x128xbf16, #tpu.memory_space<vmem>>, vector<1x128x128xbf16>
    %20 = vector.shape_cast %19 : vector<1x128x128xbf16> to vector<128x128xbf16>
    %cst_16 = arith.constant dense<0.000000e+00> : vector<8x128xf32>
    %21 = tpu.matmul %18, %20, %cst_16 {dimension_numbers = #tpu.dot_dimension_numbers<[1], [0], [0], [1], [0, 0, 1, 1], [], []>} : vector<8x128xbf16>, vector<128x128xbf16>, vector<8x128xf32> -> vector<8x128xf32>
    %c1_17 = arith.constant 1 : index
    %c0_18 = arith.constant 0 : index
    %c0_19 = arith.constant 0 : index
    %22 = vector.load %arg5[%c1_17, %c0_18, %c0_19] : memref<3x1x128xf32, #tpu.memory_space<vmem>>, vector<1x1x128xf32>
    %23 = vector.shape_cast %22 : vector<1x1x128xf32> to vector<1x128xf32>
    %24 = vector.broadcast %23 : vector<1x128xf32> to vector<8x128xf32>
    %25 = arith.addf %21, %24 : vector<8x128xf32>
    %cst_20 = arith.constant 0.000000e+00 : f32
    %26 = vector.broadcast %cst_20 : f32 to vector<8x128xf32>
    %27 = arith.maximumf %25, %26 : vector<8x128xf32>
    %28 = arith.truncf %27 : vector<8x128xf32> to vector<8x128xbf16>
    %c2 = arith.constant 2 : index
    %c0_21 = arith.constant 0 : index
    %c0_22 = arith.constant 0 : index
    %29 = vector.load %arg4[%c2, %c0_21, %c0_22] : memref<3x128x128xbf16, #tpu.memory_space<vmem>>, vector<1x128x128xbf16>
    %30 = vector.shape_cast %29 : vector<1x128x128xbf16> to vector<128x128xbf16>
    %cst_23 = arith.constant dense<0.000000e+00> : vector<8x128xf32>
    %31 = tpu.matmul %28, %30, %cst_23 {dimension_numbers = #tpu.dot_dimension_numbers<[1], [0], [0], [1], [0, 0, 1, 1], [], []>} : vector<8x128xbf16>, vector<128x128xbf16>, vector<8x128xf32> -> vector<8x128xf32>
    %c2_24 = arith.constant 2 : index
    %c0_25 = arith.constant 0 : index
    %c0_26 = arith.constant 0 : index
    %32 = vector.load %arg5[%c2_24, %c0_25, %c0_26] : memref<3x1x128xf32, #tpu.memory_space<vmem>>, vector<1x1x128xf32>
    %33 = vector.shape_cast %32 : vector<1x1x128xf32> to vector<1x128xf32>
    %34 = vector.broadcast %33 : vector<1x128xf32> to vector<8x128xf32>
    %35 = arith.addf %31, %34 : vector<8x128xf32>
    %cst_27 = arith.constant 0.000000e+00 : f32
    %36 = vector.broadcast %cst_27 : f32 to vector<8x128xf32>
    %37 = arith.maximumf %35, %36 : vector<8x128xf32>
    %38 = arith.truncf %37 : vector<8x128xf32> to vector<8x128xbf16>
    %c0_28 = arith.constant 0 : index
    %c0_29 = arith.constant 0 : index
    %39 = vector.load %arg6[%c0_28, %c0_29] : memref<128x128xbf16, #tpu.memory_space<vmem>>, vector<128x128xbf16>
    %cst_30 = arith.constant dense<0.000000e+00> : vector<8x128xf32>
    %40 = tpu.matmul %38, %39, %cst_30 {dimension_numbers = #tpu.dot_dimension_numbers<[1], [0], [0], [1], [0, 0, 1, 1], [], []>} : vector<8x128xbf16>, vector<128x128xbf16>, vector<8x128xf32> -> vector<8x128xf32>
    %c0_31 = arith.constant 0 : index
    %c0_32 = arith.constant 0 : index
    %41 = vector.load %arg7[%c0_31, %c0_32] : memref<1x128xf32, #tpu.memory_space<vmem>>, vector<1x128xf32>
    %42 = vector.broadcast %41 : vector<1x128xf32> to vector<8x128xf32>
    %43 = arith.addf %40, %42 : vector<8x128xf32>
    %44 = tpu.iota {dimensions = array<i32: 1>} : vector<8x128xi32>
    %c4_i32 = arith.constant 4 : i32
    %45 = vector.broadcast %c4_i32 : i32 to vector<8x128xi32>
    %46 = arith.cmpi slt, %44, %45 : vector<8x128xi32>
    %cst_33 = arith.constant -1.000000e+30 : f32
    %47 = vector.broadcast %cst_33 : f32 to vector<8x128xf32>
    %48 = arith.select %46, %43, %47 : vector<8x128xi1>, vector<8x128xf32>
    %cst_34 = arith.constant dense<0xFF800000> : vector<8xf32>
    %49 = vector.multi_reduction <maximumf>, %48, %cst_34 [1] : vector<8x128xf32> to vector<8xf32>
    %50 = vector.shape_cast %49 : vector<8xf32> to vector<8x1xf32>
    %51 = vector.broadcast %50 : vector<8x1xf32> to vector<8x128xf32>
    %52 = arith.subf %48, %51 : vector<8x128xf32>
    %53 = math.exp %52 : vector<8x128xf32>
    %cst_35 = arith.constant dense<0.000000e+00> : vector<8xf32>
    %54 = vector.multi_reduction <add>, %53, %cst_35 [1] : vector<8x128xf32> to vector<8xf32>
    %55 = vector.shape_cast %54 : vector<8xf32> to vector<8x1xf32>
    %56 = tpu.reciprocal %55 {approx = true} : vector<8x1xf32> -> vector<8x1xf32>
    %57 = arith.mulf %55, %56 : vector<8x1xf32>
    %cst_36 = arith.constant 2.000000e+00 : f32
    %58 = vector.broadcast %cst_36 : f32 to vector<8x1xf32>
    %59 = arith.subf %58, %57 : vector<8x1xf32>
    %60 = arith.mulf %56, %59 : vector<8x1xf32>
    %61 = vector.broadcast %60 : vector<8x1xf32> to vector<8x128xf32>
    %62 = arith.mulf %53, %61 : vector<8x128xf32>
    %c0_37 = arith.constant 0 : index
    %c0_38 = arith.constant 0 : index
    %63 = vector.load %arg8[%c0_37, %c0_38] : memref<8x128xf32, #tpu.memory_space<vmem>>, vector<8x128xf32>
    tpu.vector_store %arg8[%c0_37, %c0_38], %62 {strides = array<i32>} : memref<8x128xf32, #tpu.memory_space<vmem>>, vector<8x128xf32>,
    return
  }
  func.func @transform_0(%arg0: i32) -> (i32, i32) {
    %c0_i32 = arith.constant 0 : i32
    %c0_i32_0 = arith.constant 0 : i32
    return %arg0, %c0_i32 : i32, i32
  }
  func.func @transform_1(%arg0: i32) -> (i32, i32) {
    %c0_i32 = arith.constant 0 : i32
    %c0_i32_0 = arith.constant 0 : i32
    %c0_i32_1 = arith.constant 0 : i32
    return %c0_i32, %c0_i32_0 : i32, i32
  }
  func.func @transform_2(%arg0: i32) -> (i32, i32) {
    %c0_i32 = arith.constant 0 : i32
    %c0_i32_0 = arith.constant 0 : i32
    %c0_i32_1 = arith.constant 0 : i32
    return %c0_i32, %c0_i32_0 : i32, i32
  }
  func.func @transform_3(%arg0: i32) -> (i32, i32, i32) {
    %c0_i32 = arith.constant 0 : i32
    %c0_i32_0 = arith.constant 0 : i32
    %c0_i32_1 = arith.constant 0 : i32
    %c0_i32_2 = arith.constant 0 : i32
    return %c0_i32, %c0_i32_0, %c0_i32_1 : i32, i32, i32
  }
  func.func @transform_4(%arg0: i32) -> (i32, i32, i32) {
    %c0_i32 = arith.constant 0 : i32
    %c0_i32_0 = arith.constant 0 : i32
    %c0_i32_1 = arith.constant 0 : i32
    %c0_i32_2 = arith.constant 0 : i32
    return %c0_i32, %c0_i32_0, %c0_i32_1 : i32, i32, i32
  }
  func.func @transform_5(%arg0: i32) -> (i32, i32) {
    %c0_i32 = arith.constant 0 : i32
    %c0_i32_0 = arith.constant 0 : i32
    %c0_i32_1 = arith.constant 0 : i32
    return %c0_i32, %c0_i32_0 : i32, i32
  }
  func.func @transform_6(%arg0: i32) -> (i32, i32) {
    %c0_i32 = arith.constant 0 : i32
    %c0_i32_0 = arith.constant 0 : i32
    %c0_i32_1 = arith.constant 0 : i32
    return %c0_i32, %c0_i32_0 : i32, i32
  }
  func.func @transform_7(%arg0: i32) -> (i32, i32) {
    %c0_i32 = arith.constant 0 : i32
    %c0_i32_0 = arith.constant 0 : i32
    return %arg0, %c0_i32 : i32, i32
  }
}

</mosaic_0001>

<llo_original>
// kernel: tpu_custom_call.1
$region0: #{tpu_custom_call.1}
  #allocation0 [shape = 'u32[]', space=smem, size = 0x4, offset = 0x4, fixed_abs, tag = 'smem constant byte address 0x4 - core index']
  #allocation1 [shape = 'u32[144,128]{1,0:T(1,128)}', space=vmem, size = 0x12000, scoped, tag = 'internal scratch']
  %s0 = inlined_call_operand.hbm [shape: bf16[8,16], index: 0, kind: input, shape index: {}]
  %s1 = inlined_call_operand.hbm [shape: bf16[16,128], index: 1, kind: input, shape index: {}]
  %s2 = inlined_call_operand.vmem [shape: f32[1,128], index: 2, kind: input, shape index: {}]
  %s3 = inlined_call_operand.hbm [shape: bf16[3,128,128], index: 3, kind: input, shape index: {}]
  %s4 = inlined_call_operand.vmem [shape: f32[3,1,128], index: 4, kind: input, shape index: {}]
  %s5 = inlined_call_operand.hbm [shape: bf16[128,128], index: 5, kind: input, shape index: {}]
  %s6 = inlined_call_operand.vmem [shape: f32[1,128], index: 6, kind: input, shape index: {}]
  %s7 = inlined_call_operand.hbm [shape: f32[8,128], index: 7, kind: output, shape index: {}]
  %s8 = sld [smem:[#allocation0]]
  $region54: #{tpu_custom_call.1} parent=0
    _
  %s10 = ssub.s32 1, %s8
  %s11 = scalar_select 0, %s10, %s8
  $region1: #{tpu_custom_call.1} parent=0
    #allocation2 [shape = 'u8[2048]{0}', space=vmem, size = 0x800, scoped, tag = 'input window, operand 0, single buffered']
    #allocation3 [shape = 's32[1]{0}', space=sflag, size = 0x4, scoped, tag = 'scoped memory for tpu_custom_call.1']
    #allocation4 [shape = 's32[1]{0}', space=sflag, size = 0x4, scoped, tag = 'scoped memory for tpu_custom_call.1']
    #allocation5 [shape = 'u8[4096]{0}', space=vmem, size = 0x1000, scoped, tag = 'input window, operand 1, single buffered']
    #allocation6 [shape = 's32[1]{0}', space=sflag, size = 0x4, scoped, tag = 'scoped memory for tpu_custom_call.1']
    #allocation7 [shape = 'u8[98304]{0}', space=vmem, size = 0x18000, scoped, tag = 'input window, operand 3, single buffered']
    #allocation8 [shape = 'u8[32768]{0}', space=vmem, size = 0x8000, scoped, tag = 'input window, operand 5, single buffered']
    #allocation9 [shape = 's32[1]{0}', space=sflag, size = 0x4, scoped, tag = 'scoped memory for tpu_custom_call.1']
    #allocation10 [shape = 'u8[4096]{0}', space=vmem, size = 0x1000, scoped, tag = 'output window, operand 0, single buffered']
    %12 = vsyncpa [#allocation3], 0
    %13 = vsyncpa [#allocation6], 0
    %14 = vsyncpa [#allocation9], 0
    %15 = vsyncpa [#allocation4], 0
    // Predicated region
    $region2: #{tpu_custom_call.1} parent=1 // pred_check
      _
    $region3: #{tpu_custom_call.1} parent=1 // pred_check_branch
      %17 = sbr.rel (0) target = $region5
    $region4: #{tpu_custom_call.1} parent=1 // pred_region
      %s19 = ssub.s32 64, 64
      %20 = vsyncadd [#allocation3], %s19
      %s22 = sshll.u32 [#allocation2], 4
      %s23 = int_to_ptr.vmem [resolvable:$true] %s22
      %25 = dma.hbm_to_vmem [thread:$0]  %s0, 64, %s23, [#allocation3]
    $region5: #{tpu_custom_call.1} parent=1 // pred_fallthru
      _
    // Predicated region
    $region6: #{tpu_custom_call.1} parent=1 // pred_check
      _
    $region7: #{tpu_custom_call.1} parent=1 // pred_check_branch
      %27 = sbr.rel (0) target = $region9
    $region8: #{tpu_custom_call.1} parent=1 // pred_region
      %s29 = ssub.s32 128, 128
      %30 = vsyncadd [#allocation6], %s29
      %s31 = sshll.u32 [#allocation5], 4
      %s32 = int_to_ptr.vmem [resolvable:$true] %s31
      %37 = dma.hbm_to_vmem [thread:$0]  %s1, 128, %s32, [#allocation6], 64, 64, 4
    $region9: #{tpu_custom_call.1} parent=1 // pred_fallthru
      _
    // Predicated region
    $region10: #{tpu_custom_call.1} parent=1 // pred_check
      _
    $region11: #{tpu_custom_call.1} parent=1 // pred_check_branch
      %39 = sbr.rel (0) target = $region13
    $region12: #{tpu_custom_call.1} parent=1 // pred_region
      _
    $region13: #{tpu_custom_call.1} parent=1 // pred_fallthru
      _
    // Predicated region
    $region14: #{tpu_custom_call.1} parent=1 // pred_check
      _
    $region15: #{tpu_custom_call.1} parent=1 // pred_check_branch
      %41 = sbr.rel (0) target = $region17
    $region16: #{tpu_custom_call.1} parent=1 // pred_region
      %s43 = ssub.s32 3072, 3072
      %44 = vsyncadd [#allocation6], %s43
      %s45 = sshll.u32 [#allocation7], 4
      %s46 = int_to_ptr.vmem [resolvable:$true] %s45
      %51 = dma.hbm_to_vmem [thread:$0]  %s3, 3072, %s46, [#allocation6], 64, 64, 4
    $region17: #{tpu_custom_call.1} parent=1 // pred_fallthru
      _
    // Predicated region
    $region18: #{tpu_custom_call.1} parent=1 // pred_check
      _
    $region19: #{tpu_custom_call.1} parent=1 // pred_check_branch
      %53 = sbr.rel (0) target = $region21
    $region20: #{tpu_custom_call.1} parent=1 // pred_region
      _
    $region21: #{tpu_custom_call.1} parent=1 // pred_fallthru
      _
    // Predicated region
    $region22: #{tpu_custom_call.1} parent=1 // pred_check
      _
    $region23: #{tpu_custom_call.1} parent=1 // pred_check_branch
      %55 = sbr.rel (0) target = $region25
    $region24: #{tpu_custom_call.1} parent=1 // pred_region
      %s57 = ssub.s32 1024, 1024
      %58 = vsyncadd [#allocation9], %s57
      %s59 = sshll.u32 [#allocation8], 4
      %s60 = int_to_ptr.vmem [resolvable:$true] %s59
      %65 = dma.hbm_to_vmem [thread:$0]  %s5, 1024, %s60, [#allocation9], 64, 64, 4
    $region25: #{tpu_custom_call.1} parent=1 // pred_fallthru
      _
    // Predicated region
    $region26: #{tpu_custom_call.1} parent=1 // pred_check
      _
    $region27: #{tpu_custom_call.1} parent=1 // pred_check_branch
      %67 = sbr.rel (0) target = $region29
    $region28: #{tpu_custom_call.1} parent=1 // pred_region
      _
    $region29: #{tpu_custom_call.1} parent=1 // pred_fallthru
      _
    // Predicated region
    $region30: #{tpu_custom_call.1} parent=1 // pred_check
      _
    $region31: #{tpu_custom_call.1} parent=1 // pred_check_branch
      %69 = sbr.rel (0) target = $region33
    $region32: #{tpu_custom_call.1} parent=1 // pred_region
      %70 = dma.done [#allocation3], 64
    $region33: #{tpu_custom_call.1} parent=1 // pred_fallthru
      _
    // Predicated region
    $region34: #{tpu_custom_call.1} parent=1 // pred_check
      _
    $region35: #{tpu_custom_call.1} parent=1 // pred_check_branch
      %72 = sbr.rel (0) target = $region37
    $region36: #{tpu_custom_call.1} parent=1 // pred_region
      %73 = dma.done [#allocation6], 128
    $region37: #{tpu_custom_call.1} parent=1 // pred_fallthru
      _
    // Predicated region
    $region38: #{tpu_custom_call.1} parent=1 // pred_check
      _
    $region39: #{tpu_custom_call.1} parent=1 // pred_check_branch
      %75 = sbr.rel (0) target = $region41
    $region40: #{tpu_custom_call.1} parent=1 // pred_region
      %76 = dma.done [#allocation6], 3072
    $region41: #{tpu_custom_call.1} parent=1 // pred_fallthru
      _
    // Predicated region
    $region42: #{tpu_custom_call.1} parent=1 // pred_check
      _
    $region43: #{tpu_custom_call.1} parent=1 // pred_check_branch
      %78 = sbr.rel (0) target = $region45
    $region44: #{tpu_custom_call.1} parent=1 // pred_region
      %79 = dma.done [#allocation9], 1024
    $region45: #{tpu_custom_call.1} parent=1 // pred_fallthru
      _
    %v81 = vld [vmem:[#allocation2] sm:$0xf]
    %v82 = vld [vmem:[#allocation5] sm:$0xf]
    %v83 = vld [vmem:[#allocation5 + $0x4] sm:$0xf]
    %v84 = vld [vmem:[%s2] sm:$0x1]
    %v86 = vlaneseq
    %v87 = vshrl.u32 %v86, 7
    %v88 = vsub.s32 0, %v87
    %v89 = vrot.slane %v84, %v88
    %v93 = vunpack.c.l.b16 %v82
    %v94 = vunpack.c.l.b16 %v83
    %v95 = vpack.c.b16 %v94, %v93
    %vm97 = vcmask 130048
    %v99 = vsel %vm97, %v81, 0
    %101 = vmatprep.subr.bf16.mxu0 0
    %102 = vmatpush1.bf16.msra.mxu0 0
    %103 = vmatprep.subr.bf16.mxu0 0
    %104 = vmatpush1.bf16.msra.mxu0 0
    %105 = vmatprep.subr.bf16.mxu0 0
    %106 = vmatpush1.bf16.msra.mxu0 0
    %107 = vmatprep.subr.bf16.mxu0 0
    %108 = vmatpush1.bf16.msra.mxu0 0
    %109 = vmatprep.subr.bf16.mxu0 0
    %110 = vmatpush1.bf16.msra.mxu0 0
    %111 = vmatprep.subr.bf16.mxu0 0
    %112 = vmatpush1.bf16.msra.mxu0 0
    %113 = vmatprep.subr.bf16.mxu0 0
    %114 = vmatpush1.bf16.msra.mxu0 0
    %115 = vmatprep.subr.bf16.mxu0 0
    %116 = vmatpush1.bf16.msra.mxu0 %v95
    %117 = vmatprep.subr.bf16.mxu0 0
    %118 = vmatpush2.bf16.msra.mxu0 0
    %119 = vmatprep.subr.bf16.mxu0 0
    %120 = vmatpush2.bf16.msra.mxu0 0
    %121 = vmatprep.subr.bf16.mxu0 0
    %122 = vmatpush2.bf16.msra.mxu0 0
    %123 = vmatprep.subr.bf16.mxu0 0
    %124 = vmatpush2.bf16.msra.mxu0 0
    %125 = vmatprep.subr.bf16.mxu0 0
    %126 = vmatpush2.bf16.msra.mxu0 0
    %127 = vmatprep.subr.bf16.mxu0 0
    %128 = vmatpush2.bf16.msra.mxu0 0
    %129 = vmatprep.subr.bf16.mxu0 0
    %130 = vmatpush2.bf16.msra.mxu0 0
    %131 = vmatprep.subr.bf16.mxu0 0
    %132 = vmatpush2.bf16.msra.mxu0 0
    %133 = vmatprep.mubr.bf16.mxu0 0
    %134 = vmatmul.mubr.bf16.gmra.mxu0 %v99
    %v135 = vpop.f32.mrf.mxu0
    %v136 = vadd.f32 %v89, %v135
    %v137 = vpop.f32.mrf.mxu0
    %v138 = vpop.f32.mrf.mxu0
    %v139 = vpop.f32.mrf.mxu0
    %140 = vdwg.mxu0
    %v141 = vmax.f32 %v136, 0.0
    %v142 = vpack.c.bf16 %v141, %v141
    %v143 = vld [vmem:[#allocation7] sm:$0xf]
    %v144 = vld [vmem:[#allocation7 + $0x4] sm:$0xf]
    %v145 = vld [vmem:[#allocation7 + $0x8] sm:$0xf]
    %v146 = vld [vmem:[#allocation7 + $0xc] sm:$0xf]
    %v147 = vld [vmem:[#allocation7 + $0x10] sm:$0xf]
    %v148 = vld [vmem:[#allocation7 + $0x14] sm:$0xf]
    %v149 = vld [vmem:[#allocation7 + $0x18] sm:$0xf]
    %v150 = vld [vmem:[#allocation7 + $0x1c] sm:$0xf]
    %v151 = vld [vmem:[#allocation7 + $0x20] sm:$0xf]
    %v152 = vld [vmem:[#allocation7 + $0x24] sm:$0xf]
    %v153 = vld [vmem:[#allocation7 + $0x28] sm:$0xf]
    %v154 = vld [vmem:[#allocation7 + $0x2c] sm:$0xf]
    %v155 = vld [vmem:[#allocation7 + $0x30] sm:$0xf]
    %v156 = vld [vmem:[#allocation7 + $0x34] sm:$0xf]
    %v157 = vld [vmem:[#allocation7 + $0x38] sm:$0xf]
    %v158 = vld [vmem:[#allocation7 + $0x3c] sm:$0xf]
    %v159 = vld [vmem:[%s4] sm:$0x1]
    %v161 = vlaneseq
    %v162 = vshrl.u32 %v161, 7
    %v163 = vsub.s32 0, %v162
    %v164 = vrot.slane %v159, %v163
    %v182 = vunpack.c.l.b16 %v143
    %v183 = vunpack.c.l.b16 %v144
    %v184 = vunpack.c.l.b16 %v145
    %v185 = vunpack.c.l.b16 %v146
    %v186 = vunpack.c.l.b16 %v147
    %v187 = vunpack.c.l.b16 %v148
    %v188 = vunpack.c.l.b16 %v149
    %v189 = vunpack.c.l.b16 %v150
    %v190 = vunpack.c.l.b16 %v151
    %v191 = vunpack.c.l.b16 %v152
    %v192 = vunpack.c.l.b16 %v153
    %v193 = vunpack.c.l.b16 %v154
    %v194 = vunpack.c.l.b16 %v155
    %v195 = vunpack.c.l.b16 %v156
    %v196 = vunpack.c.l.b16 %v157
    %v197 = vunpack.c.l.b16 %v158
    %v198 = vpack.c.b16 %v183, %v182
    %v199 = vpack.c.b16 %v185, %v184
    %v200 = vpack.c.b16 %v187, %v186
    %v201 = vpack.c.b16 %v189, %v188
    %v202 = vpack.c.b16 %v191, %v190
    %v203 = vpack.c.b16 %v193, %v192
    %v204 = vpack.c.b16 %v195, %v194
    %v205 = vpack.c.b16 %v197, %v196
    %214 = vmatprep.subr.bf16.mxu0 0
    %215 = vmatpush1.bf16.msra.mxu0 %v205
    %216 = vmatprep.subr.bf16.mxu0 0
    %217 = vmatpush1.bf16.msra.mxu0 %v204
    %218 = vmatprep.subr.bf16.mxu0 0
    %219 = vmatpush1.bf16.msra.mxu0 %v203
    %220 = vmatprep.subr.bf16.mxu0 0
    %221 = vmatpush1.bf16.msra.mxu0 %v202
    %222 = vmatprep.subr.bf16.mxu0 0
    %223 = vmatpush1.bf16.msra.mxu0 %v201
    %224 = vmatprep.subr.bf16.mxu0 0
    %225 = vmatpush1.bf16.msra.mxu0 %v200
    %226 = vmatprep.subr.bf16.mxu0 0
    %227 = vmatpush1.bf16.msra.mxu0 %v199
    %228 = vmatprep.subr.bf16.mxu0 0
    %229 = vmatpush1.bf16.msra.mxu0 %v198
    %230 = vmatprep.subr.bf16.mxu0 0
    %231 = vmatpush2.bf16.msra.mxu0 0
    %232 = vmatprep.subr.bf16.mxu0 0
    %233 = vmatpush2.bf16.msra.mxu0 0
    %234 = vmatprep.subr.bf16.mxu0 0
    %235 = vmatpush2.bf16.msra.mxu0 0
    %236 = vmatprep.subr.bf16.mxu0 0
    %237 = vmatpush2.bf16.msra.mxu0 0
    %238 = vmatprep.subr.bf16.mxu0 0
    %239 = vmatpush2.bf16.msra.mxu0 0
    %240 = vmatprep.subr.bf16.mxu0 0
    %241 = vmatpush2.bf16.msra.mxu0 0
    %242 = vmatprep.subr.bf16.mxu0 0
    %243 = vmatpush2.bf16.msra.mxu0 0
    %244 = vmatprep.subr.bf16.mxu0 0
    %245 = vmatpush2.bf16.msra.mxu0 0
    %246 = vmatprep.mubr.bf16.mxu0 0
    %247 = vmatmul.mubr.bf16.gmra.mxu0 %v142
    %v248 = vpop.f32.mrf.mxu0
    %v249 = vadd.f32 %v164, %v248
    %v250 = vpop.f32.mrf.mxu0
    %v251 = vpop.f32.mrf.mxu0
    %v252 = vpop.f32.mrf.mxu0
    %253 = vdwg.mxu0
    %v254 = vmax.f32 %v249, 0.0
    %v255 = vpack.c.bf16 %v254, %v254
    %s256 = scalar_lea.vmem [#allocation7], 64
    %v257 = vld [vmem:[%s256] sm:$0xf]
    %v258 = vld [vmem:[%s256 + $0x4] sm:$0xf]
    %v259 = vld [vmem:[%s256 + $0x8] sm:$0xf]
    %v260 = vld [vmem:[%s256 + $0xc] sm:$0xf]
    %v261 = vld [vmem:[%s256 + $0x10] sm:$0xf]
    %v262 = vld [vmem:[%s256 + $0x14] sm:$0xf]
    %v263 = vld [vmem:[%s256 + $0x18] sm:$0xf]
    %v264 = vld [vmem:[%s256 + $0x1c] sm:$0xf]
    %v265 = vld [vmem:[%s256 + $0x20] sm:$0xf]
    %v266 = vld [vmem:[%s256 + $0x24] sm:$0xf]
    %v267 = vld [vmem:[%s256 + $0x28] sm:$0xf]
    %v268 = vld [vmem:[%s256 + $0x2c] sm:$0xf]
    %v269 = vld [vmem:[%s256 + $0x30] sm:$0xf]
    %v270 = vld [vmem:[%s256 + $0x34] sm:$0xf]
    %v271 = vld [vmem:[%s256 + $0x38] sm:$0xf]
    %v272 = vld [vmem:[%s256 + $0x3c] sm:$0xf]
    %s273 = scalar_lea.vmem %s4, 1
    %v274 = vld [vmem:[%s273] sm:$0x1]
    %v276 = vlaneseq
    %v277 = vshrl.u32 %v276, 7
    %v278 = vsub.s32 0, %v277
    %v279 = vrot.slane %v274, %v278
    %v297 = vunpack.c.l.b16 %v257
    %v298 = vunpack.c.l.b16 %v258
    %v299 = vunpack.c.l.b16 %v259
    %v300 = vunpack.c.l.b16 %v260
    %v301 = vunpack.c.l.b16 %v261
    %v302 = vunpack.c.l.b16 %v262
    %v303 = vunpack.c.l.b16 %v263
    %v304 = vunpack.c.l.b16 %v264
    %v305 = vunpack.c.l.b16 %v265
    %v306 = vunpack.c.l.b16 %v266
    %v307 = vunpack.c.l.b16 %v267
    %v308 = vunpack.c.l.b16 %v268
    %v309 = vunpack.c.l.b16 %v269
    %v310 = vunpack.c.l.b16 %v270
    %v311 = vunpack.c.l.b16 %v271
    %v312 = vunpack.c.l.b16 %v272
    %v313 = vpack.c.b16 %v298, %v297
    %v314 = vpack.c.b16 %v300, %v299
    %v315 = vpack.c.b16 %v302, %v301
    %v316 = vpack.c.b16 %v304, %v303
    %v317 = vpack.c.b16 %v306, %v305
    %v318 = vpack.c.b16 %v308, %v307
    %v319 = vpack.c.b16 %v310, %v309
    %v320 = vpack.c.b16 %v312, %v311
    %329 = vmatprep.subr.bf16.mxu0 0
    %330 = vmatpush1.bf16.msra.mxu0 %v320
    %331 = vmatprep.subr.bf16.mxu0 0
    %332 = vmatpush1.bf16.msra.mxu0 %v319
    %333 = vmatprep.subr.bf16.mxu0 0
    %334 = vmatpush1.bf16.msra.mxu0 %v318
    %335 = vmatprep.subr.bf16.mxu0 0
    %336 = vmatpush1.bf16.msra.mxu0 %v317
    %337 = vmatprep.subr.bf16.mxu0 0
    %338 = vmatpush1.bf16.msra.mxu0 %v316
    %339 = vmatprep.subr.bf16.mxu0 0
    %340 = vmatpush1.bf16.msra.mxu0 %v315
    %341 = vmatprep.subr.bf16.mxu0 0
    %342 = vmatpush1.bf16.msra.mxu0 %v314
    %343 = vmatprep.subr.bf16.mxu0 0
    %344 = vmatpush1.bf16.msra.mxu0 %v313
    %345 = vmatprep.subr.bf16.mxu0 0
    %346 = vmatpush2.bf16.msra.mxu0 0
    %347 = vmatprep.subr.bf16.mxu0 0
    %348 = vmatpush2.bf16.msra.mxu0 0
    %349 = vmatprep.subr.bf16.mxu0 0
    %350 = vmatpush2.bf16.msra.mxu0 0
    %351 = vmatprep.subr.bf16.mxu0 0
    %352 = vmatpush2.bf16.msra.mxu0 0
    %353 = vmatprep.subr.bf16.mxu0 0
    %354 = vmatpush2.bf16.msra.mxu0 0
    %355 = vmatprep.subr.bf16.mxu0 0
    %356 = vmatpush2.bf16.msra.mxu0 0
    %357 = vmatprep.subr.bf16.mxu0 0
    %358 = vmatpush2.bf16.msra.mxu0 0
    %359 = vmatprep.subr.bf16.mxu0 0
    %360 = vmatpush2.bf16.msra.mxu0 0
    %361 = vmatprep.mubr.bf16.mxu0 0
    %362 = vmatmul.mubr.bf16.gmra.mxu0 %v255
    %v363 = vpop.f32.mrf.mxu0
    %v364 = vadd.f32 %v279, %v363
    %v365 = vpop.f32.mrf.mxu0
    %v366 = vpop.f32.mrf.mxu0
    %v367 = vpop.f32.mrf.mxu0
    %368 = vdwg.mxu0
    %v369 = vmax.f32 %v364, 0.0
    %v370 = vpack.c.bf16 %v369, %v369
    %s371 = scalar_lea.vmem [#allocation7], 128
    %v372 = vld [vmem:[%s371] sm:$0xf]
    %v373 = vld [vmem:[%s371 + $0x4] sm:$0xf]
    %v374 = vld [vmem:[%s371 + $0x8] sm:$0xf]
    %v375 = vld [vmem:[%s371 + $0xc] sm:$0xf]
    %v376 = vld [vmem:[%s371 + $0x10] sm:$0xf]
    %v377 = vld [vmem:[%s371 + $0x14] sm:$0xf]
    %v378 = vld [vmem:[%s371 + $0x18] sm:$0xf]
    %v379 = vld [vmem:[%s371 + $0x1c] sm:$0xf]
    %v380 = vld [vmem:[%s371 + $0x20] sm:$0xf]
    %v381 = vld [vmem:[%s371 + $0x24] sm:$0xf]
    %v382 = vld [vmem:[%s371 + $0x28] sm:$0xf]
    %v383 = vld [vmem:[%s371 + $0x2c] sm:$0xf]
    %v384 = vld [vmem:[%s371 + $0x30] sm:$0xf]
    %v385 = vld [vmem:[%s371 + $0x34] sm:$0xf]
    %v386 = vld [vmem:[%s371 + $0x38] sm:$0xf]
    %v387 = vld [vmem:[%s371 + $0x3c] sm:$0xf]
    %s388 = scalar_lea.vmem %s4, 2
    %v389 = vld [vmem:[%s388] sm:$0x1]
    %v391 = vlaneseq
    %v392 = vshrl.u32 %v391, 7
    %v393 = vsub.s32 0, %v392
    %v394 = vrot.slane %v389, %v393
    %v412 = vunpack.c.l.b16 %v372
    %v413 = vunpack.c.l.b16 %v373
    %v414 = vunpack.c.l.b16 %v374
    %v415 = vunpack.c.l.b16 %v375
    %v416 = vunpack.c.l.b16 %v376
    %v417 = vunpack.c.l.b16 %v377
    %v418 = vunpack.c.l.b16 %v378
    %v419 = vunpack.c.l.b16 %v379
    %v420 = vunpack.c.l.b16 %v380
    %v421 = vunpack.c.l.b16 %v381
    %v422 = vunpack.c.l.b16 %v382
    %v423 = vunpack.c.l.b16 %v383
    %v424 = vunpack.c.l.b16 %v384
    %v425 = vunpack.c.l.b16 %v385
    %v426 = vunpack.c.l.b16 %v386
    %v427 = vunpack.c.l.b16 %v387
    %v428 = vpack.c.b16 %v413, %v412
    %v429 = vpack.c.b16 %v415, %v414
    %v430 = vpack.c.b16 %v417, %v416
    %v431 = vpack.c.b16 %v419, %v418
    %v432 = vpack.c.b16 %v421, %v420
    %v433 = vpack.c.b16 %v423, %v422
    %v434 = vpack.c.b16 %v425, %v424
    %v435 = vpack.c.b16 %v427, %v426
    %444 = vmatprep.subr.bf16.mxu0 0
    %445 = vmatpush1.bf16.msra.mxu0 %v435
    %446 = vmatprep.subr.bf16.mxu0 0
    %447 = vmatpush1.bf16.msra.mxu0 %v434
    %448 = vmatprep.subr.bf16.mxu0 0
    %449 = vmatpush1.bf16.msra.mxu0 %v433
    %450 = vmatprep.subr.bf16.mxu0 0
    %451 = vmatpush1.bf16.msra.mxu0 %v432
    %452 = vmatprep.subr.bf16.mxu0 0
    %453 = vmatpush1.bf16.msra.mxu0 %v431
    %454 = vmatprep.subr.bf16.mxu0 0
    %455 = vmatpush1.bf16.msra.mxu0 %v430
    %456 = vmatprep.subr.bf16.mxu0 0
    %457 = vmatpush1.bf16.msra.mxu0 %v429
    %458 = vmatprep.subr.bf16.mxu0 0
    %459 = vmatpush1.bf16.msra.mxu0 %v428
    %460 = vmatprep.subr.bf16.mxu0 0
    %461 = vmatpush2.bf16.msra.mxu0 0
    %462 = vmatprep.subr.bf16.mxu0 0
    %463 = vmatpush2.bf16.msra.mxu0 0
    %464 = vmatprep.subr.bf16.mxu0 0
    %465 = vmatpush2.bf16.msra.mxu0 0
    %466 = vmatprep.subr.bf16.mxu0 0
    %467 = vmatpush2.bf16.msra.mxu0 0
    %468 = vmatprep.subr.bf16.mxu0 0
    %469 = vmatpush2.bf16.msra.mxu0 0
    %470 = vmatprep.subr.bf16.mxu0 0
    %471 = vmatpush2.bf16.msra.mxu0 0
    %472 = vmatprep.subr.bf16.mxu0 0
    %473 = vmatpush2.bf16.msra.mxu0 0
    %474 = vmatprep.subr.bf16.mxu0 0
    %475 = vmatpush2.bf16.msra.mxu0 0
    %476 = vmatprep.mubr.bf16.mxu0 0
    %477 = vmatmul.mubr.bf16.gmra.mxu0 %v370
    %v478 = vpop.f32.mrf.mxu0
    %v479 = vadd.f32 %v394, %v478
    %v480 = vpop.f32.mrf.mxu0
    %v481 = vpop.f32.mrf.mxu0
    %v482 = vpop.f32.mrf.mxu0
    %483 = vdwg.mxu0
    %v484 = vmax.f32 %v479, 0.0
    %v485 = vpack.c.bf16 %v484, %v484
    %v486 = vld [vmem:[#allocation8] sm:$0xf]
    %v487 = vld [vmem:[#allocation8 + $0x4] sm:$0xf]
    %v488 = vld [vmem:[#allocation8 + $0x8] sm:$0xf]
    %v489 = vld [vmem:[#allocation8 + $0xc] sm:$0xf]
    %v490 = vld [vmem:[#allocation8 + $0x10] sm:$0xf]
    %v491 = vld [vmem:[#allocation8 + $0x14] sm:$0xf]
    %v492 = vld [vmem:[#allocation8 + $0x18] sm:$0xf]
    %v493 = vld [vmem:[#allocation8 + $0x1c] sm:$0xf]
    %v494 = vld [vmem:[#allocation8 + $0x20] sm:$0xf]
    %v495 = vld [vmem:[#allocation8 + $0x24] sm:$0xf]
    %v496 = vld [vmem:[#allocation8 + $0x28] sm:$0xf]
    %v497 = vld [vmem:[#allocation8 + $0x2c] sm:$0xf]
    %v498 = vld [vmem:[#allocation8 + $0x30] sm:$0xf]
    %v499 = vld [vmem:[#allocation8 + $0x34] sm:$0xf]
    %v500 = vld [vmem:[#allocation8 + $0x38] sm:$0xf]
    %v501 = vld [vmem:[#allocation8 + $0x3c] sm:$0xf]
    %v502 = vld [vmem:[%s6] sm:$0x1]
    %v504 = vlaneseq
    %v505 = vshrl.u32 %v504, 7
    %v506 = vsub.s32 0, %v505
    %v507 = vrot.slane %v502, %v506
    %v525 = vunpack.c.l.b16 %v486
    %v526 = vunpack.c.l.b16 %v487
    %v527 = vunpack.c.l.b16 %v488
    %v528 = vunpack.c.l.b16 %v489
    %v529 = vunpack.c.l.b16 %v490
    %v530 = vunpack.c.l.b16 %v491
    %v531 = vunpack.c.l.b16 %v492
    %v532 = vunpack.c.l.b16 %v493
    %v533 = vunpack.c.l.b16 %v494
    %v534 = vunpack.c.l.b16 %v495
    %v535 = vunpack.c.l.b16 %v496
    %v536 = vunpack.c.l.b16 %v497
    %v537 = vunpack.c.l.b16 %v498
    %v538 = vunpack.c.l.b16 %v499
    %v539 = vunpack.c.l.b16 %v500
    %v540 = vunpack.c.l.b16 %v501
    %v541 = vpack.c.b16 %v526, %v525
    %v542 = vpack.c.b16 %v528, %v527
    %v543 = vpack.c.b16 %v530, %v529
    %v544 = vpack.c.b16 %v532, %v531
    %v545 = vpack.c.b16 %v534, %v533
    %v546 = vpack.c.b16 %v536, %v535
    %v547 = vpack.c.b16 %v538, %v537
    %v548 = vpack.c.b16 %v540, %v539
    %557 = vmatprep.subr.bf16.mxu0 0
    %558 = vmatpush1.bf16.msra.mxu0 %v548
    %559 = vmatprep.subr.bf16.mxu0 0
    %560 = vmatpush1.bf16.msra.mxu0 %v547
    %561 = vmatprep.subr.bf16.mxu0 0
    %562 = vmatpush1.bf16.msra.mxu0 %v546
    %563 = vmatprep.subr.bf16.mxu0 0
    %564 = vmatpush1.bf16.msra.mxu0 %v545
    %565 = vmatprep.subr.bf16.mxu0 0
    %566 = vmatpush1.bf16.msra.mxu0 %v544
    %567 = vmatprep.subr.bf16.mxu0 0
    %568 = vmatpush1.bf16.msra.mxu0 %v543
    %569 = vmatprep.subr.bf16.mxu0 0
    %570 = vmatpush1.bf16.msra.mxu0 %v542
    %571 = vmatprep.subr.bf16.mxu0 0
    %572 = vmatpush1.bf16.msra.mxu0 %v541
    %573 = vmatprep.subr.bf16.mxu0 0
    %574 = vmatpush2.bf16.msra.mxu0 0
    %575 = vmatprep.subr.bf16.mxu0 0
    %576 = vmatpush2.bf16.msra.mxu0 0
    %577 = vmatprep.subr.bf16.mxu0 0
    %578 = vmatpush2.bf16.msra.mxu0 0
    %579 = vmatprep.subr.bf16.mxu0 0
    %580 = vmatpush2.bf16.msra.mxu0 0
    %581 = vmatprep.subr.bf16.mxu0 0
    %582 = vmatpush2.bf16.msra.mxu0 0
    %583 = vmatprep.subr.bf16.mxu0 0
    %584 = vmatpush2.bf16.msra.mxu0 0
    %585 = vmatprep.subr.bf16.mxu0 0
    %586 = vmatpush2.bf16.msra.mxu0 0
    %587 = vmatprep.subr.bf16.mxu0 0
    %588 = vmatpush2.bf16.msra.mxu0 0
    %589 = vmatprep.mubr.bf16.mxu0 0
    %590 = vmatmul.mubr.bf16.gmra.mxu0 %v485
    %v591 = vpop.f32.mrf.mxu0
    %v592 = vadd.f32 %v507, %v591
    %v593 = vpop.f32.mrf.mxu0
    %v594 = vpop.f32.mrf.mxu0
    %v595 = vpop.f32.mrf.mxu0
    %596 = vdwg.mxu0
    %v597 = vlaneseq
    %v598 = vand.u32 %v597, 127
    %vm599 = vcmp.lt.s32.totalorder %v598, 4
    %v600 = vsel %vm599, %v592, -1e+30
    %601 = vmax.xlane.f32.xlu0 %v600
    %v602 = vpop.xlane.xlu0 %601
    %v603 = vsub.f32 %v600, %v602
    %v604 = vmul.f32 %v603, 1.442695
    %v605 = vpow.pop %v604
    %606 = vadd.xlane.f32.xlu0 %v605
    %v607 = vpop.xlane.xlu0 %606
    %v608 = vrcp.pop %v607
    %v609 = vmul.f32 %v607, %v608
    %v610 = vsub.f32 2.0, %v609
    %v611 = vmul.f32 %v608, %v610
    %v612 = vmul.f32 %v605, %v611
    %613 = vst [vmem:[#allocation10] sm:$0xff] %v612
    // Predicated region
    $region46: #{tpu_custom_call.1} parent=1 // pred_check
      _
    $region47: #{tpu_custom_call.1} parent=1 // pred_check_branch
      %615 = sbr.rel (0) target = $region49
    $region48: #{tpu_custom_call.1} parent=1 // pred_region
      %s617 = ssub.s32 128, 128
      %618 = vsyncadd [#allocation4], %s617
      %s620 = sshll.u32 [#allocation10], 4
      %s621 = int_to_ptr.vmem [resolvable:$true] %s620
      %623 = dma.vmem_to_hbm [thread:$0]  %s621, 128, %s7, [#allocation4]
    $region49: #{tpu_custom_call.1} parent=1 // pred_fallthru
      _
    // Predicated region
    $region50: #{tpu_custom_call.1} parent=1 // pred_check
      _
    $region51: #{tpu_custom_call.1} parent=1 // pred_check_branch
      %625 = sbr.rel (0) target = $region53
    $region52: #{tpu_custom_call.1} parent=1 // pred_region
      %626 = dma.done [#allocation4], 128
    $region53: #{tpu_custom_call.1} parent=1 // pred_fallthru
      _
    %627 = vsyncpa [#allocation3], 1
    %628 = vsyncpa [#allocation6], 1
    %629 = vsyncpa [#allocation9], 1
    %630 = vsyncpa [#allocation4], 1

</llo_original>
